<compile_context>
chip_gen: v6e
topology: v6e:2x2x1
jax: 0.10.0
libtpu: 0.0.40
codegen_flags: <defaults>
</compile_context>

<pallas_src>
import math
import functools

import jax
import jax.numpy as jnp
from jax import lax
from jax.experimental import pallas as pl
from jax.experimental.pallas import tpu as pltpu

# Large finite negative instead of -inf so KV tiles whose rows are entirely
# masked do not poison the online-softmax statistics with NaNs.
_MASK_VALUE = -1e30


def _round_up(x, m):
    return (x + m - 1) // m * m


def _make_kernel(*, scale, dropout_p, seed, causal, has_mask, mask_is_bool,
                 lk, lk_pad, tq, tk):
    def kernel(*refs):
        if has_mask:
            q_ref, k_ref, v_ref, mask_ref = refs[:4]
            o_ref, m_scr, l_scr, acc_scr, qs_scr = refs[4:]
        else:
            q_ref, k_ref, v_ref = refs[:3]
            mask_ref = None
            o_ref, m_scr, l_scr, acc_scr, qs_scr = refs[3:]

        qi = pl.program_id(2)
        ki = pl.program_id(3)
        nk = pl.num_programs(3)

        @pl.when(ki == 0)
        def _init():
            m_scr[...] = jnp.full_like(m_scr, _MASK_VALUE)
            l_scr[...] = jnp.zeros_like(l_scr)
            acc_scr[...] = jnp.zeros_like(acc_scr)
            # Hoisted out of the kv loop: fold 1/sqrt(E) into the resident
            # (tq, E) q block exactly once per q tile.
            qs_scr[...] = q_ref[...] * scale

        def accumulate():
            # Contract head dims directly (no k.T); MXU operands stay in the
            # input/compute dtype, accumulation in f32.
            s = lax.dot_general(qs_scr[...], k_ref[...], (((1,), (1,)), ((), ())),
                                preferred_element_type=jnp.float32)   # (tq, tk) f32

            if has_mask:
                mblk = mask_ref[...]                      # (tq|1, tk|1), broadcasts vs s
                if mask_is_bool:
                    s = jnp.where(mblk != 0, s, _MASK_VALUE)
                else:
                    s = s + mblk.astype(jnp.float32)      # additive bias (streamed as bf16)
            if causal or lk_pad != lk:
                col = ki * tk + lax.broadcasted_iota(jnp.int32, (tq, tk), 1)
                if causal:
                    row = qi * tq + lax.broadcasted_iota(jnp.int32, (tq, tk), 0)
                    s = jnp.where(row >= col, s, _MASK_VALUE)
                if lk_pad != lk:                          # keys added by padding
                    s = jnp.where(col < lk, s, _MASK_VALUE)

            # Online softmax update.  Note: a row masked on *all* keys yields a
            # uniform average of V (not PyTorch's NaN) because a finite mask
            # value is used; only differs in that degenerate case.
            m_prev = m_scr[...]                                       # (tq, 1)
            m_new = jnp.maximum(m_prev, jnp.max(s, axis=-1, keepdims=True))
            alpha = jnp.exp(m_prev - m_new)
            p = jnp.exp(s - m_new)                                    # (tq, tk) f32
            l_scr[...] = alpha * l_scr[...] + jnp.sum(p, axis=-1, keepdims=True)
            m_scr[...] = m_new

            pv = p.astype(v_ref.dtype)                                # MXU-friendly dtype
            if dropout_p > 0.0:
                # TODO(synk): TPU hardware PRNG; statistically equivalent to but
                # not bit-identical with PyTorch's dropout RNG stream.
                pltpu.prng_seed(seed, pl.program_id(0), pl.program_id(1), qi, ki)
                bits = pltpu.prng_random_bits((tq, tk))
                if bits.dtype != jnp.uint32:
                    bits = pltpu.bitcast(bits, jnp.uint32)
                thresh = jnp.uint32(min(int(dropout_p * 4294967296.0), 4294967295))
                pv = jnp.where(bits >= thresh, pv, jnp.zeros_like(pv))

            acc_scr[...] = alpha * acc_scr[...] + jnp.dot(
                pv, v_ref[...], preferred_element_type=jnp.float32)

        if causal:
            # Compute only tiles touching / below the diagonal.  The matching
            # index_map clamp means the DMA for skipped tiles is elided too.
            @pl.when(ki * tk <= qi * tq + (tq - 1))
            def _():
                accumulate()
        else:
            accumulate()

        @pl.when(ki == nk - 1)
        def _finalize():
            exact = (o_ref.dtype == jnp.float32)          # tighter norm for f32 outputs
            inv_l = pl.reciprocal(l_scr[...], approx=not exact)
            out = acc_scr[...] * inv_l
            if dropout_p > 0.0:
                out = out * (1.0 / (1.0 - dropout_p))     # folded dropout rescale
            o_ref[...] = out.astype(o_ref.dtype)

    return kernel


def softmax_attention(queries, keys, values, attn_mask=None, dropout_p=0.0,
                      causal=False, seed=0, compute_dtype=None, tq=None, tk=None):
    """Pallas equivalent of nn.functional.scaled_dot_product_attention.

    queries/keys/values: (B, H, L, E).  attn_mask: bool (True = attend) or
    additive float, broadcastable to (B, H, Lq, Lk) per torch semantics.
    compute_dtype: optionally cast Q/K/V (e.g. jnp.bfloat16) for the MXU path;
    softmax statistics and the accumulator always stay f32.
    """
    B, H, Lq, E = queries.shape
    Lk = keys.shape[2]
    scale = 1.0 / math.sqrt(E)
    out_dtype = queries.dtype

    if compute_dtype is not None and compute_dtype != queries.dtype:
        queries = queries.astype(compute_dtype)
        keys = keys.astype(compute_dtype)
        values = values.astype(compute_dtype)

    # Tile sizes.  tq=256 fills the 256-row MXU of v6e/v7x and halves K/V/mask
    # re-streaming vs tq=128 while staying within v5e's 16 MiB scoped VMEM;
    # head dim is kept unpadded (block last dim == full E is legal), so small
    # heads (E=32/64) pay no padding bandwidth.
    if tq is None:
        tq = 256 if Lq >= 256 else _round_up(Lq, 8)
    if tk is None:
        tk = 512 if Lk >= 512 else _round_up(Lk, 128)
    Lq_pad = _round_up(Lq, tq)
    Lk_pad = _round_up(Lk, tk)

    def pad_seq(x, L, Lp):
        if Lp == L:
            return x
        return jnp.pad(x, ((0, 0), (0, 0), (0, Lp - L), (0, 0)))

    qp = pad_seq(queries, Lq, Lq_pad)
    kp = pad_seq(keys, Lk, Lk_pad)
    vp = pad_seq(values, Lk, Lk_pad)

    # Causal: clamp the kv block index so above-diagonal grid steps repeat the
    # previous block index and the pipeliner elides the K/V/mask DMA.
    if causal:
        def kv_idx(qi, ki):
            return jnp.minimum(ki, (qi * tq + tq - 1) // tk)
    else:
        def kv_idx(qi, ki):
            return ki

    inputs = [qp, kp, vp]
    in_specs = [
        pl.BlockSpec((None, None, tq, E), lambda b, h, qi, ki: (b, h, qi, 0)),
        pl.BlockSpec((None, None, tk, E), lambda b, h, qi, ki: (b, h, kv_idx(qi, ki), 0)),
        pl.BlockSpec((None, None, tk, E), lambda b, h, qi, ki: (b, h, kv_idx(qi, ki), 0)),
    ]

    has_mask = attn_mask is not None
    mask_is_bool = False
    if has_mask:
        m = attn_mask
        while m.ndim < 4:                      # torch broadcasts from the right
            m = m[None]
        mB, mH, mLq, mLk = (int(d) for d in m.shape)
        mask_is_bool = (m.dtype == jnp.bool_) or jnp.issubdtype(m.dtype, jnp.integer)
        if mask_is_bool:
            m = (m != 0).astype(jnp.int8)      # 1 B/elem instead of a 4 B f32 bias
        else:
            m = m.astype(jnp.bfloat16)         # additive bias: halve the HBM stream
        # Keep broadcast (size-1) axes size-1 — no host-side broadcast_to —
        # and only pad axes that are actually materialized.
        pad_q = (Lq_pad - mLq) if mLq > 1 else 0
        pad_k = (Lk_pad - mLk) if mLk > 1 else 0
        if pad_q or pad_k:
            m = jnp.pad(m, ((0, 0), (0, 0), (0, pad_q), (0, pad_k)))
        mq_blk = tq if mLq > 1 else 1
        mk_blk = tk if mLk > 1 else 1

        def mask_idx(b, h, qi, ki):
            return (b if mB > 1 else 0,
                    h if mH > 1 else 0,
                    qi if mLq > 1 else 0,
                    kv_idx(qi, ki) if mLk > 1 else 0)

        # TODO(synk): bit-packing the bool mask (8 bools/byte) and a per-tile
        # all-ones/all-zeros prefetch table would shrink the mask stream
        # further for dense explicit masks.
        in_specs.append(pl.BlockSpec((None, None, mq_blk, mk_blk), mask_idx))
        inputs.append(m)

    kernel = _make_kernel(scale=scale, dropout_p=float(dropout_p), seed=int(seed),
                          causal=bool(causal), has_mask=has_mask,
                          mask_is_bool=mask_is_bool,
                          lk=Lk, lk_pad=Lk_pad, tq=tq, tk=tk)

    out = pl.pallas_call(
        kernel,
        out_shape=jax.ShapeDtypeStruct((B, H, Lq_pad, E), out_dtype),
        grid=(B, H, Lq_pad // tq, Lk_pad // tk),
        in_specs=in_specs,
        out_specs=pl.BlockSpec((None, None, tq, E), lambda b, h, qi, ki: (b, h, qi, 0)),
        scratch_shapes=[pltpu.VMEM((tq, 1), jnp.float32),      # running max
                        pltpu.VMEM((tq, 1), jnp.float32),      # running sum
                        pltpu.VMEM((tq, E), jnp.float32),      # output accumulator
                        pltpu.VMEM((tq, E), queries.dtype)],   # pre-scaled q block
        compiler_params=pltpu.CompilerParams(
            dimension_semantics=("parallel", "parallel", "parallel", "arbitrary"),
            # 32 MiB is the v6e/v7x default and safe on v5e; gives headroom for
            # large head dims without risking the v7x 64 MiB physical budget.
            vmem_limit_bytes=32 * 1024 * 1024),
    )(*inputs)

    return out[:, :, :Lq, :]


def _reference_sdpa(q, k, v, attn_mask, causal):
    # pure-JAX reference (dropout_p == 0)
    B, H, Lq, E = q.shape
    Lk = k.shape[2]
    scale = 1.0 / math.sqrt(E)
    s = jnp.einsum("bhqe,bhke->bhqk", q, k).astype(jnp.float32) * scale
    if attn_mask is not None:
        if attn_mask.dtype == jnp.bool_:
            s = jnp.where(attn_mask, s, -jnp.inf)
        else:
            s = s + attn_mask.astype(jnp.float32)
    if causal:
        ci = jnp.arange(Lq)[:, None] >= jnp.arange(Lk)[None, :]
        s = jnp.where(ci, s, -jnp.inf)
    w = jax.nn.softmax(s, axis=-1)
    return jnp.einsum("bhqk,bhke->bhqe", w, v).astype(q.dtype)


if __name__ == "__main__":
    B, H, L, E = 2, 4, 8, 32
    key = jax.random.PRNGKey(0)
    kq, kk, kv, km = jax.random.split(key, 4)

    queries = jax.random.normal(kq, (B, H, L, E), dtype=jnp.float32)
    keys = jax.random.normal(kk, (B, H, L, E), dtype=jnp.float32)
    values = jax.random.normal(kv, (B, H, L, E), dtype=jnp.float32)

    # 1) full boolean attention mask (True = attend); force the diagonal so no
    #    query row is fully masked.
    attn_mask = jax.random.bernoulli(km, 0.7, (B, H, L, L))
    attn_mask = attn_mask | jnp.eye(L, dtype=jnp.bool_)[None, None]

    out = softmax_attention(queries, keys, values, attn_mask=attn_mask,
                            dropout_p=0.0, causal=False)
    out = jax.block_until_ready(out)
    ref = _reference_sdpa(queries, keys, values, attn_mask, causal=False)
    assert out.shape == (B, H, L, E)
    assert jnp.allclose(out, ref, atol=2e-3, rtol=2e-3), "mismatch vs reference (masked)"

    # 2) causal, no mask (exercises the in-kernel iota mask + DMA-elided tiles)
    out_c = softmax_attention(queries, keys, values, attn_mask=None,
                              dropout_p=0.0, causal=True)
    out_c = jax.block_until_ready(out_c)
    ref_c = _reference_sdpa(queries, keys, values, None, causal=True)
    assert jnp.allclose(out_c, ref_c, atol=2e-3, rtol=2e-3), "mismatch vs reference (causal)"

    # 3) key-padding mask with broadcast (B, 1, 1, Lk) — exercises the
    #    size-1-axis mask streaming path (no host-side broadcast).
    lengths = jnp.array([5, 7], dtype=jnp.int32)
    kp_mask = (jnp.arange(L)[None, :] < lengths[:, None]).reshape(B, 1, 1, L)
    out_p = softmax_attention(queries, keys, values, attn_mask=kp_mask,
                              dropout_p=0.0, causal=False)
    out_p = jax.block_until_ready(out_p)
    ref_p = _reference_sdpa(queries, keys, values, kp_mask, causal=False)
    assert jnp.allclose(out_p, ref_p, atol=2e-3, rtol=2e-3), "mismatch vs reference (padding mask)"

    print("KERNEL_OK")
</pallas_src>

<mosaic_0001>
module attributes {stable_mosaic.version = 11 : i64} {
  func.func @kernel(%arg0: i32, %arg1: i32, %arg2: i32, %arg3: i32, %arg4: memref<1x1x8x32xf32, #tpu.memory_space<vmem>>, %arg5: memref<1x1x128x32xf32, #tpu.memory_space<vmem>>, %arg6: memref<1x1x128x32xf32, #tpu.memory_space<vmem>>, %arg7: memref<1x1x8x128xi8, #tpu.memory_space<vmem>>, %arg8: memref<1x1x8x32xf32, #tpu.memory_space<vmem>>, %arg9: memref<8x1xf32, #tpu.memory_space<vmem>>, %arg10: memref<8x1xf32, #tpu.memory_space<vmem>>, %arg11: memref<8x32xf32, #tpu.memory_space<vmem>>, %arg12: memref<8x32xf32, #tpu.memory_space<vmem>>) attributes {dimension_semantics = [#tpu.dimension_semantics<parallel>, #tpu.dimension_semantics<parallel>, #tpu.dimension_semantics<parallel>, #tpu.dimension_semantics<arbitrary>], iteration_bounds = array<i64: 2, 4, 1, 1>, scalar_prefetch = 0 : i64, scratch_operands = 4 : i64, tpu.core_type = #tpu.core_type<tc>, window_params = [{transform_indices = @transform_0, window_bounds = array<i64: 1, 1, 8, 32>}, {transform_indices = @transform_1, window_bounds = array<i64: 1, 1, 128, 32>}, {transform_indices = @transform_2, window_bounds = array<i64: 1, 1, 128, 32>}, {transform_indices = @transform_3, window_bounds = array<i64: 1, 1, 8, 128>}, {transform_indices = @transform_4, window_bounds = array<i64: 1, 1, 8, 32>}]} {
    %c0_i32 = arith.constant 0 : i32
    %0 = arith.cmpi eq, %arg3, %c0_i32 : i32
    %1 = arith.extui %0 : i1 to i32
    %c0_i32_0 = arith.constant 0 : i32
    %2 = arith.cmpi ne, %1, %c0_i32_0 : i32
    scf.if %2 {
      %cst_33 = arith.constant -1.000000e+30 : f32
      %48 = vector.broadcast %cst_33 : f32 to vector<8x1xf32>
      %c0_34 = arith.constant 0 : index
      %c0_35 = arith.constant 0 : index
      %49 = vector.load %arg9[%c0_34, %c0_35] : memref<8x1xf32, #tpu.memory_space<vmem>>, vector<8x1xf32>
      tpu.vector_store %arg9[%c0_34, %c0_35], %48 {strides = array<i32>} : memref<8x1xf32, #tpu.memory_space<vmem>>, vector<8x1xf32>,
      %cst_36 = arith.constant 0.000000e+00 : f32
      %50 = vector.broadcast %cst_36 : f32 to vector<8x1xf32>
      %c0_37 = arith.constant 0 : index
      %c0_38 = arith.constant 0 : index
      %51 = vector.load %arg10[%c0_37, %c0_38] : memref<8x1xf32, #tpu.memory_space<vmem>>, vector<8x1xf32>
      tpu.vector_store %arg10[%c0_37, %c0_38], %50 {strides = array<i32>} : memref<8x1xf32, #tpu.memory_space<vmem>>, vector<8x1xf32>,
      %cst_39 = arith.constant 0.000000e+00 : f32
      %52 = vector.broadcast %cst_39 : f32 to vector<8x32xf32>
      %c0_40 = arith.constant 0 : index
      %c0_41 = arith.constant 0 : index
      %53 = vector.load %arg11[%c0_40, %c0_41] : memref<8x32xf32, #tpu.memory_space<vmem>>, vector<8x32xf32>
      tpu.vector_store %arg11[%c0_40, %c0_41], %52 {strides = array<i32>} : memref<8x32xf32, #tpu.memory_space<vmem>>, vector<8x32xf32>,
      %c0_42 = arith.constant 0 : index
      %c0_43 = arith.constant 0 : index
      %c0_44 = arith.constant 0 : index
      %c0_45 = arith.constant 0 : index
      %54 = vector.load %arg4[%c0_42, %c0_43, %c0_44, %c0_45] : memref<1x1x8x32xf32, #tpu.memory_space<vmem>>, vector<1x1x8x32xf32>
      %55 = vector.shape_cast %54 : vector<1x1x8x32xf32> to vector<8x32xf32>
      %cst_46 = arith.constant 0.176776692 : f32
      %56 = vector.broadcast %cst_46 : f32 to vector<8x32xf32>
      %57 = arith.mulf %55, %56 : vector<8x32xf32>
      %c0_47 = arith.constant 0 : index
      %c0_48 = arith.constant 0 : index
      %58 = vector.load %arg12[%c0_47, %c0_48] : memref<8x32xf32, #tpu.memory_space<vmem>>, vector<8x32xf32>
      tpu.vector_store %arg12[%c0_47, %c0_48], %57 {strides = array<i32>} : memref<8x32xf32, #tpu.memory_space<vmem>>, vector<8x32xf32>,
    } else {
    }
    %c0 = arith.constant 0 : index
    %c0_1 = arith.constant 0 : index
    %3 = vector.load %arg12[%c0, %c0_1] : memref<8x32xf32, #tpu.memory_space<vmem>>, vector<8x32xf32>
    %c0_2 = arith.constant 0 : index
    %c0_3 = arith.constant 0 : index
    %c0_4 = arith.constant 0 : index
    %c0_5 = arith.constant 0 : index
    %4 = vector.load %arg5[%c0_2, %c0_3, %c0_4, %c0_5] : memref<1x1x128x32xf32, #tpu.memory_space<vmem>>, vector<1x1x128x32xf32>
    %5 = vector.shape_cast %4 : vector<1x1x128x32xf32> to vector<128x32xf32>
    %cst = arith.constant dense<0.000000e+00> : vector<8x128xf32>
    %6 = tpu.matmul %3, %5, %cst {dimension_numbers = #tpu.dot_dimension_numbers<[1], [1], [0], [0], [0, 0, 1, 0], [], []>} : vector<8x32xf32>, vector<128x32xf32>, vector<8x128xf32> -> vector<8x128xf32>
    %c0_6 = arith.constant 0 : index
    %c0_7 = arith.constant 0 : index
    %c0_8 = arith.constant 0 : index
    %c0_9 = arith.constant 0 : index
    %7 = vector.load %arg7[%c0_6, %c0_7, %c0_8, %c0_9] : memref<1x1x8x128xi8, #tpu.memory_space<vmem>>, vector<1x1x8x128xi8>
    %8 = vector.shape_cast %7 : vector<1x1x8x128xi8> to vector<8x128xi8>
    %c0_i8 = arith.constant 0 : i8
    %9 = vector.broadcast %c0_i8 : i8 to vector<8x128xi8>
    %10 = arith.cmpi ne, %8, %9 : vector<8x128xi8>
    %cst_10 = arith.constant -1.000000e+30 : f32
    %11 = vector.broadcast %cst_10 : f32 to vector<8x128xf32>
    %12 = arith.select %10, %6, %11 : vector<8x128xi1>, vector<8x128xf32>
    %c128_i32 = arith.constant 128 : i32
    %13 = arith.muli %arg3, %c128_i32 : i32
    %14 = tpu.iota {dimensions = array<i32: 1>} : vector<8x128xi32>
    %15 = vector.broadcast %13 : i32 to vector<8x128xi32>
    %16 = arith.addi %15, %14 : vector<8x128xi32>
    %c8_i32 = arith.constant 8 : i32
    %17 = vector.broadcast %c8_i32 : i32 to vector<8x128xi32>
    %18 = arith.cmpi slt, %16, %17 : vector<8x128xi32>
    %cst_11 = arith.constant -1.000000e+30 : f32
    %19 = vector.broadcast %cst_11 : f32 to vector<8x128xf32>
    %20 = arith.select %18, %12, %19 : vector<8x128xi1>, vector<8x128xf32>
    %c0_12 = arith.constant 0 : index
    %c0_13 = arith.constant 0 : index
    %21 = vector.load %arg9[%c0_12, %c0_13] : memref<8x1xf32, #tpu.memory_space<vmem>>, vector<8x1xf32>
    %cst_14 = arith.constant dense<0xFF800000> : vector<8xf32>
    %22 = vector.multi_reduction <maximumf>, %20, %cst_14 [1] : vector<8x128xf32> to vector<8xf32>
    %23 = vector.shape_cast %22 : vector<8xf32> to vector<8x1xf32>
    %24 = arith.maximumf %21, %23 : vector<8x1xf32>
    %25 = arith.subf %21, %24 : vector<8x1xf32>
    %26 = math.exp %25 : vector<8x1xf32>
    %27 = vector.broadcast %24 : vector<8x1xf32> to vector<8x128xf32>
    %28 = arith.subf %20, %27 : vector<8x128xf32>
    %29 = math.exp %28 : vector<8x128xf32>
    %c0_15 = arith.constant 0 : index
    %c0_16 = arith.constant 0 : index
    %30 = vector.load %arg10[%c0_15, %c0_16] : memref<8x1xf32, #tpu.memory_space<vmem>>, vector<8x1xf32>
    %31 = arith.mulf %26, %30 : vector<8x1xf32>
    %cst_17 = arith.constant dense<0.000000e+00> : vector<8xf32>
    %32 = vector.multi_reduction <add>, %29, %cst_17 [1] : vector<8x128xf32> to vector<8xf32>
    %33 = vector.shape_cast %32 : vector<8xf32> to vector<8x1xf32>
    %34 = arith.addf %31, %33 : vector<8x1xf32>
    %c0_18 = arith.constant 0 : index
    %c0_19 = arith.constant 0 : index
    %35 = vector.load %arg10[%c0_18, %c0_19] : memref<8x1xf32, #tpu.memory_space<vmem>>, vector<8x1xf32>
    tpu.vector_store %arg10[%c0_18, %c0_19], %34 {strides = array<i32>} : memref<8x1xf32, #tpu.memory_space<vmem>>, vector<8x1xf32>,
    %c0_20 = arith.constant 0 : index
    %c0_21 = arith.constant 0 : index
    %36 = vector.load %arg9[%c0_20, %c0_21] : memref<8x1xf32, #tpu.memory_space<vmem>>, vector<8x1xf32>
    tpu.vector_store %arg9[%c0_20, %c0_21], %24 {strides = array<i32>} : memref<8x1xf32, #tpu.memory_space<vmem>>, vector<8x1xf32>,
    %c0_22 = arith.constant 0 : index
    %c0_23 = arith.constant 0 : index
    %37 = vector.load %arg11[%c0_22, %c0_23] : memref<8x32xf32, #tpu.memory_space<vmem>>, vector<8x32xf32>
    %38 = vector.broadcast %26 : vector<8x1xf32> to vector<8x32xf32>
    %39 = arith.mulf %38, %37 : vector<8x32xf32>
    %c0_24 = arith.constant 0 : index
    %c0_25 = arith.constant 0 : index
    %c0_26 = arith.constant 0 : index
    %c0_27 = arith.constant 0 : index
    %40 = vector.load %arg6[%c0_24, %c0_25, %c0_26, %c0_27] : memref<1x1x128x32xf32, #tpu.memory_space<vmem>>, vector<1x1x128x32xf32>
    %41 = vector.shape_cast %40 : vector<1x1x128x32xf32> to vector<128x32xf32>
    %cst_28 = arith.constant dense<0.000000e+00> : vector<8x32xf32>
    %42 = tpu.matmul %29, %41, %cst_28 {dimension_numbers = #tpu.dot_dimension_numbers<[1], [0], [0], [1], [0, 0, 1, 1], [], []>} : vector<8x128xf32>, vector<128x32xf32>, vector<8x32xf32> -> vector<8x32xf32>
    %43 = arith.addf %39, %42 : vector<8x32xf32>
    %c0_29 = arith.constant 0 : index
    %c0_30 = arith.constant 0 : index
    %44 = vector.load %arg11[%c0_29, %c0_30] : memref<8x32xf32, #tpu.memory_space<vmem>>, vector<8x32xf32>
    tpu.vector_store %arg11[%c0_29, %c0_30], %43 {strides = array<i32>} : memref<8x32xf32, #tpu.memory_space<vmem>>, vector<8x32xf32>,
    %c0_i32_31 = arith.constant 0 : i32
    %45 = arith.cmpi eq, %arg3, %c0_i32_31 : i32
    %46 = arith.extui %45 : i1 to i32
    %c0_i32_32 = arith.constant 0 : i32
    %47 = arith.cmpi ne, %46, %c0_i32_32 : i32
    scf.if %47 {
      %c0_33 = arith.constant 0 : index
      %c0_34 = arith.constant 0 : index
      %48 = vector.load %arg10[%c0_33, %c0_34] : memref<8x1xf32, #tpu.memory_space<vmem>>, vector<8x1xf32>
      %49 = tpu.reciprocal %48 : vector<8x1xf32> -> vector<8x1xf32>
      %c0_35 = arith.constant 0 : index
      %c0_36 = arith.constant 0 : index
      %50 = vector.load %arg11[%c0_35, %c0_36] : memref<8x32xf32, #tpu.memory_space<vmem>>, vector<8x32xf32>
      %51 = vector.broadcast %49 : vector<8x1xf32> to vector<8x32xf32>
      %52 = arith.mulf %50, %51 : vector<8x32xf32>
      %c0_37 = arith.constant 0 : index
      %c0_38 = arith.constant 0 : index
      %c0_39 = arith.constant 0 : index
      %c0_40 = arith.constant 0 : index
      %53 = vector.load %arg8[%c0_37, %c0_38, %c0_39, %c0_40] : memref<1x1x8x32xf32, #tpu.memory_space<vmem>>, vector<1x1x8x32xf32>
      %54 = vector.shape_cast %53 : vector<1x1x8x32xf32> to vector<8x32xf32>
      %55 = vector.shape_cast %52 : vector<8x32xf32> to vector<1x1x8x32xf32>
      tpu.vector_store %arg8[%c0_37, %c0_38, %c0_39, %c0_40], %55 {strides = array<i32>} : memref<1x1x8x32xf32, #tpu.memory_space<vmem>>, vector<1x1x8x32xf32>,
    } else {
    }
    return
  }
  func.func @transform_0(%arg0: i32, %arg1: i32, %arg2: i32, %arg3: i32) -> (i32, i32, i32, i32) {
    %c0_i32 = arith.constant 0 : i32
    %c0_i32_0 = arith.constant 0 : i32
    return %arg0, %arg1, %arg2, %c0_i32 : i32, i32, i32, i32
  }
  func.func @transform_1(%arg0: i32, %arg1: i32, %arg2: i32, %arg3: i32) -> (i32, i32, i32, i32) {
    %c0_i32 = arith.constant 0 : i32
    %c0_i32_0 = arith.constant 0 : i32
    return %arg0, %arg1, %arg3, %c0_i32 : i32, i32, i32, i32
  }
  func.func @transform_2(%arg0: i32, %arg1: i32, %arg2: i32, %arg3: i32) -> (i32, i32, i32, i32) {
    %c0_i32 = arith.constant 0 : i32
    %c0_i32_0 = arith.constant 0 : i32
    return %arg0, %arg1, %arg3, %c0_i32 : i32, i32, i32, i32
  }
  func.func @transform_3(%arg0: i32, %arg1: i32, %arg2: i32, %arg3: i32) -> (i32, i32, i32, i32) {
    %c0_i32 = arith.constant 0 : i32
    return %arg0, %arg1, %arg2, %arg3 : i32, i32, i32, i32
  }
  func.func @transform_4(%arg0: i32, %arg1: i32, %arg2: i32, %arg3: i32) -> (i32, i32, i32, i32) {
    %c0_i32 = arith.constant 0 : i32
    %c0_i32_0 = arith.constant 0 : i32
    return %arg0, %arg1, %arg2, %c0_i32 : i32, i32, i32, i32
  }
}

</mosaic_0001>

<llo_original>
// kernel: tpu_custom_call.1
$region0: #{tpu_custom_call.1}
  #allocation0 [shape = 'u32[]', space=smem, size = 0x4, offset = 0x4, fixed_abs, tag = 'smem constant byte address 0x4 - core index']
  #allocation1 [shape = 'u32[144,128]{1,0:T(1,128)}', space=vmem, size = 0x12000, scoped, tag = 'internal scratch']
  #allocation2 [shape = 'f32[8,1]{1,0:T(8,128)}', space=vmem, size = 0x1000, scoped, tag = 'scratch operand']
  #allocation3 [shape = 'f32[8,1]{1,0:T(8,128)}', space=vmem, size = 0x1000, scoped, tag = 'scratch operand']
  #allocation4 [shape = 'f32[8,32]{1,0:T(8,128)}', space=vmem, size = 0x1000, scoped, tag = 'scratch operand']
  #allocation5 [shape = 'f32[8,32]{1,0:T(8,128)}', space=vmem, size = 0x1000, scoped, tag = 'scratch operand']
  %s0 = inlined_call_operand.vmem [shape: f32[2,4,8,32], index: 0, kind: input, shape index: {}]
  %s1 = inlined_call_operand.vmem [shape: f32[2,4,128,32], index: 1, kind: input, shape index: {}]
  %s2 = inlined_call_operand.vmem [shape: f32[2,4,128,32], index: 2, kind: input, shape index: {}]
  %s3 = inlined_call_operand.vmem [shape: s8[2,4,8,128], index: 3, kind: input, shape index: {}]
  %s4 = inlined_call_operand.hbm [shape: f32[2,4,8,32], index: 4, kind: output, shape index: {}]
  %s5 = sld [smem:[#allocation0]]
  $region57: #{tpu_custom_call.1} parent=0
    _
  %s7 = ssub.s32 1, %s5
  %s8 = scalar_select 0, %s7, %s5
  $region1: #{tpu_custom_call.1} parent=0
    #allocation6 [shape = 'u8[8192]{0}', space=vmem, size = 0x2000, scoped, tag = 'output window, operand 0']
    #allocation7 [shape = 's32[2]{0}', space=sflag, size = 0x8, scoped, tag = 'scoped memory for tpu_custom_call.1']
    %9 = vsyncpa [#allocation7], 0
    %s10 = scalar_lea.sflag [#allocation7], 1
    %11 = vsyncpa %s10, 0
    loop: start=0, step=1, limit=10
    $region2: #{tpu_custom_call.1} parent=1 // loop_pre_header
      _
    $region3: #{tpu_custom_call.1} parent=1 // loop_header
      %s13 = sphi 0, %s17
      %p14 = scmp.ge.s32.totalorder %s13, 10
      %s20 = sphi 0, %s46
      %s21 = sphi 0, %s42
      %s22 = sphi 0, %s38
      %s23 = sphi 0, %s34
      %s24 = sphi 0, %s20
      %s25 = sphi 0, %s21
      %s26 = sphi 0, %s22
      %s27 = sphi 0, %s23
      %s28 = sphi 0, %s24
      %s29 = sphi 0, %s25
      %s30 = sphi 0, %s26
      %s31 = sphi 0, %s27
      %s53 = sphi 0, %s55
      %s56 = sphi 0, %s53
      %s57 = sphi 0, %s56
      %s73 = sphi 0, %s57
      %s83 = sphi 0, %s85
      %s86 = sphi 0, %s83
      %s87 = sphi 0, %s86
      %s103 = sphi 0, %s87
      %s113 = sphi 0, %s115
      %s116 = sphi 0, %s113
      %s117 = sphi 0, %s116
      %s133 = sphi 0, %s117
      %s145 = sphi 0, %s147
      %s148 = sphi 0, %s145
      %s149 = sphi 0, %s148
      %s165 = sphi 0, %s149
      %s175 = sphi 0, %s177
      %s178 = sphi 0, %s175
      %s179 = sphi 0, %s178
      %s195 = sphi 0, %s179
    $region4: #{tpu_custom_call.1} parent=1 // loop_header_branch
      %16 = sbr.rel (%p14) target = $region8
    $region5: #{tpu_custom_call.1} parent=1 // loop_body
      %s18 = ssub.s32 %s13, 1
      %s19 = ssub.s32 %s13, 2
      %s32 = sadd.s32 1, %s23
      %p33 = scmp.ge.s32.totalorder %s32, 1
      %s34 = scalar_select %p33, 0, %s32
      %s35 = sadd.s32 1, %s22
      %s36 = scalar_select %p33, %s35, %s22
      %p37 = scmp.ge.s32.totalorder %s36, 1
      %s38 = scalar_select %p37, 0, %s36
      %s39 = sadd.s32 1, %s21
      %s40 = scalar_select %p37, %s39, %s21
      %p41 = scmp.ge.s32.totalorder %s40, 4
      %s42 = scalar_select %p41, 0, %s40
      %s43 = sadd.s32 1, %s20
      %s44 = scalar_select %p41, %s43, %s20
      %p45 = scmp.ge.s32.totalorder %s44, 2
      %s46 = scalar_select %p45, 0, %s44
      %s47 = ssub.s32 %s20, %s46
      %s48 = ssub.s32 %s21, %s42
      %s49 = sor.u32 %s47, %s48
      %s50 = ssub.s32 %s22, %s38
      %s51 = sor.u32 %s49, %s50
      %p52 = scmp.eq.s32.totalorder %s51, 0
      %s54 = sadd.s32 %s53, 1
      %s55 = scalar_select %p52, %s53, %s54
      %p58 = pneg %p52
      %p59 = scmp.eq.s32.totalorder %s13, 7
      %p60 = por %p58, %p59
      %p61 = scmp.ne.s32.totalorder %s53, %s56
      %p62 = scmp.eq.s32.totalorder %s13, 0
      %p63 = por %p61, %p62
      %p64 = scmp.ne.s32.totalorder %s53, %s56
      %p65 = scmp.eq.s32.totalorder %s18, 7
      %p66 = por %p64, %p65
      %p67 = scmp.ne.s32.totalorder %s56, %s57
      %p68 = scmp.eq.s32.totalorder %s18, 0
      %p69 = por %p67, %p68
      %p70 = scmp.ne.s32.totalorder %s56, %s57
      %p71 = scmp.eq.s32.totalorder %s19, 7
      %p72 = por %p70, %p71
      %p74 = scmp.ne.s32.totalorder %s57, %s73
      %p75 = scmp.eq.s32.totalorder %s19, 0
      %p76 = por %p74, %p75
      %s77 = ssub.s32 %s20, %s46
      %s78 = ssub.s32 %s21, %s42
      %s79 = sor.u32 %s77, %s78
      %s80 = ssub.s32 %s23, %s34
      %s81 = sor.u32 %s79, %s80
      %p82 = scmp.eq.s32.totalorder %s81, 0
      %s84 = sadd.s32 %s83, 1
      %s85 = scalar_select %p82, %s83, %s84
      %p88 = pneg %p82
      %p89 = scmp.eq.s32.totalorder %s13, 7
      %p90 = por %p88, %p89
      %p91 = scmp.ne.s32.totalorder %s83, %s86
      %p92 = scmp.eq.s32.totalorder %s13, 0
      %p93 = por %p91, %p92
      %p94 = scmp.ne.s32.totalorder %s83, %s86
      %p95 = scmp.eq.s32.totalorder %s18, 7
      %p96 = por %p94, %p95
      %p97 = scmp.ne.s32.totalorder %s86, %s87
      %p98 = scmp.eq.s32.totalorder %s18, 0
      %p99 = por %p97, %p98
      %p100 = scmp.ne.s32.totalorder %s86, %s87
      %p101 = scmp.eq.s32.totalorder %s19, 7
      %p102 = por %p100, %p101
      %p104 = scmp.ne.s32.totalorder %s87, %s103
      %p105 = scmp.eq.s32.totalorder %s19, 0
      %p106 = por %p104, %p105
      %s107 = ssub.s32 %s20, %s46
      %s108 = ssub.s32 %s21, %s42
      %s109 = sor.u32 %s107, %s108
      %s110 = ssub.s32 %s23, %s34
      %s111 = sor.u32 %s109, %s110
      %p112 = scmp.eq.s32.totalorder %s111, 0
      %s114 = sadd.s32 %s113, 1
      %s115 = scalar_select %p112, %s113, %s114
      %p118 = pneg %p112
      %p119 = scmp.eq.s32.totalorder %s13, 7
      %p120 = por %p118, %p119
      %p121 = scmp.ne.s32.totalorder %s113, %s116
      %p122 = scmp.eq.s32.totalorder %s13, 0
      %p123 = por %p121, %p122
      %p124 = scmp.ne.s32.totalorder %s113, %s116
      %p125 = scmp.eq.s32.totalorder %s18, 7
      %p126 = por %p124, %p125
      %p127 = scmp.ne.s32.totalorder %s116, %s117
      %p128 = scmp.eq.s32.totalorder %s18, 0
      %p129 = por %p127, %p128
      %p130 = scmp.ne.s32.totalorder %s116, %s117
      %p131 = scmp.eq.s32.totalorder %s19, 7
      %p132 = por %p130, %p131
      %p134 = scmp.ne.s32.totalorder %s117, %s133
      %p135 = scmp.eq.s32.totalorder %s19, 0
      %p136 = por %p134, %p135
      %s137 = ssub.s32 %s20, %s46
      %s138 = ssub.s32 %s21, %s42
      %s139 = sor.u32 %s137, %s138
      %s140 = ssub.s32 %s22, %s38
      %s141 = sor.u32 %s139, %s140
      %s142 = ssub.s32 %s23, %s34
      %s143 = sor.u32 %s141, %s142
      %p144 = scmp.eq.s32.totalorder %s143, 0
      %s146 = sadd.s32 %s145, 1
      %s147 = scalar_select %p144, %s145, %s146
      %p150 = pneg %p144
      %p151 = scmp.eq.s32.totalorder %s13, 7
      %p152 = por %p150, %p151
      %p153 = scmp.ne.s32.totalorder %s145, %s148
      %p154 = scmp.eq.s32.totalorder %s13, 0
      %p155 = por %p153, %p154
      %p156 = scmp.ne.s32.totalorder %s145, %s148
      %p157 = scmp.eq.s32.totalorder %s18, 7
      %p158 = por %p156, %p157
      %p159 = scmp.ne.s32.totalorder %s148, %s149
      %p160 = scmp.eq.s32.totalorder %s18, 0
      %p161 = por %p159, %p160
      %p162 = scmp.ne.s32.totalorder %s148, %s149
      %p163 = scmp.eq.s32.totalorder %s19, 7
      %p164 = por %p162, %p163
      %p166 = scmp.ne.s32.totalorder %s149, %s165
      %p167 = scmp.eq.s32.totalorder %s19, 0
      %p168 = por %p166, %p167
      %s169 = ssub.s32 %s20, %s46
      %s170 = ssub.s32 %s21, %s42
      %s171 = sor.u32 %s169, %s170
      %s172 = ssub.s32 %s22, %s38
      %s173 = sor.u32 %s171, %s172
      %p174 = scmp.eq.s32.totalorder %s173, 0
      %s176 = sadd.s32 %s175, 1
      %s177 = scalar_select %p174, %s175, %s176
      %p180 = pneg %p174
      %p181 = scmp.eq.s32.totalorder %s13, 7
      %p182 = por %p180, %p181
      %p183 = scmp.ne.s32.totalorder %s175, %s178
      %p184 = scmp.eq.s32.totalorder %s13, 0
      %p185 = por %p183, %p184
      %p186 = scmp.ne.s32.totalorder %s175, %s178
      %p187 = scmp.eq.s32.totalorder %s18, 7
      %p188 = por %p186, %p187
      %p189 = scmp.ne.s32.totalorder %s178, %s179
      %p190 = scmp.eq.s32.totalorder %s18, 0
      %p191 = por %p189, %p190
      %p192 = scmp.ne.s32.totalorder %s178, %s179
      %p193 = scmp.eq.s32.totalorder %s19, 7
      %p194 = por %p192, %p193
      %p196 = scmp.ne.s32.totalorder %s179, %s195
      %p197 = scmp.eq.s32.totalorder %s19, 0
      %p198 = por %p196, %p197
      %p199 = scmp.le.s32.totalorder 1, %s13
      %p200 = scmp.lt.s32.totalorder %s13, 9
      %p201 = pnand %p199, %p200
      %p202 = pneg %p201
      // Predicated region
      $region9: #{tpu_custom_call.1} parent=5 // pred_check
        _
      $region10: #{tpu_custom_call.1} parent=5 // pred_check_branch
        %204 = sbr.rel (%p201) target = $region12
      $region11: #{tpu_custom_call.1} parent=5 // pred_region
        %s205 = ssub.s32 %s13, 1
      $region12: #{tpu_custom_call.1} parent=5 // pred_fallthru
        _
      %p206 = scmp.lt.s32.totalorder %s13, 8
      // Predicated region
      $region13: #{tpu_custom_call.1} parent=5 // pred_check
        %p207 = pneg %p206
      $region14: #{tpu_custom_call.1} parent=5 // pred_check_branch
        %209 = sbr.rel (%p207) target = $region16
      $region15: #{tpu_custom_call.1} parent=5 // pred_region
        // Predicated region
        $region17: #{tpu_custom_call.1} parent=15 // pred_check
          %p210 = pneg %p63
        $region18: #{tpu_custom_call.1} parent=15 // pred_check_branch
          %212 = sbr.rel (%p210) target = $region20
        $region19: #{tpu_custom_call.1} parent=15 // pred_region
          %p213 = scmp.lt.s32.totalorder %s20, 1
          %s214 = scalar_select %p213, %s20, 1
          %p215 = scmp.lt.s32.totalorder %s21, 3
          %s216 = scalar_select %p215, %s21, 3
          %p217 = scmp.lt.s32.totalorder %s22, 0
          %s218 = scalar_select %p217, %s22, 0
          %s219 = sadd.s32 %s218, %s216
          %s220 = smul.addr %s214, 4
          %s221 = sadd.s32 %s219, %s220
          %s222 = smul.addr %s221, 8
          %s223 = scalar_lea.vmem %s0, %s222
        $region20: #{tpu_custom_call.1} parent=15 // pred_fallthru
          _
        // Predicated region
        $region21: #{tpu_custom_call.1} parent=15 // pred_check
          %p224 = pneg %p93
        $region22: #{tpu_custom_call.1} parent=15 // pred_check_branch
          %226 = sbr.rel (%p224) target = $region24
        $region23: #{tpu_custom_call.1} parent=15 // pred_region
          %s227 = smul.u32 16, %s23
          %p228 = scmp.lt.s32.totalorder %s20, 1
          %s229 = scalar_select %p228, %s20, 1
          %p230 = scmp.lt.s32.totalorder %s21, 3
          %s231 = scalar_select %p230, %s21, 3
          %p232 = scmp.lt.s32.totalorder %s227, 15
          %s233 = scalar_select %p232, %s227, 15
          %s234 = smul.addr %s231, 16
          %s235 = sadd.s32 %s233, %s234
          %s236 = smul.addr %s229, 64
          %s237 = sadd.s32 %s235, %s236
          %s238 = smul.addr %s237, 8
          %s239 = scalar_lea.vmem %s1, %s238
          %s240 = smul.u32 16, %s23
        $region24: #{tpu_custom_call.1} parent=15 // pred_fallthru
          _
        // Predicated region
        $region25: #{tpu_custom_call.1} parent=15 // pred_check
          %p241 = pneg %p123
        $region26: #{tpu_custom_call.1} parent=15 // pred_check_branch
          %243 = sbr.rel (%p241) target = $region28
        $region27: #{tpu_custom_call.1} parent=15 // pred_region
          %s244 = smul.u32 16, %s23
          %p245 = scmp.lt.s32.totalorder %s20, 1
          %s246 = scalar_select %p245, %s20, 1
          %p247 = scmp.lt.s32.totalorder %s21, 3
          %s248 = scalar_select %p247, %s21, 3
          %p249 = scmp.lt.s32.totalorder %s244, 15
          %s250 = scalar_select %p249, %s244, 15
          %s251 = smul.addr %s248, 16
          %s252 = sadd.s32 %s250, %s251
          %s253 = smul.addr %s246, 64
          %s254 = sadd.s32 %s252, %s253
          %s255 = smul.addr %s254, 8
          %s256 = scalar_lea.vmem %s2, %s255
          %s257 = smul.u32 16, %s23
        $region28: #{tpu_custom_call.1} parent=15 // pred_fallthru
          _
        // Predicated region
        $region29: #{tpu_custom_call.1} parent=15 // pred_check
          %p258 = pneg %p155
        $region30: #{tpu_custom_call.1} parent=15 // pred_check_branch
          %260 = sbr.rel (%p258) target = $region32
        $region31: #{tpu_custom_call.1} parent=15 // pred_region
          %p261 = scmp.lt.s32.totalorder %s20, 1
          %s262 = scalar_select %p261, %s20, 1
          %p263 = scmp.lt.s32.totalorder %s21, 3
          %s264 = scalar_select %p263, %s21, 3
          %p265 = scmp.lt.s32.totalorder %s22, 0
          %s266 = scalar_select %p265, %s22, 0
          %p267 = scmp.lt.s32.totalorder %s23, 0
          %s268 = scalar_select %p267, %s23, 0
          %s269 = sadd.s32 %s268, %s266
          %s270 = sadd.s32 %s269, %s264
          %s271 = smul.addr %s262, 4
          %s272 = sadd.s32 %s270, %s271
          %s273 = smul.addr %s272, 2
          %s274 = scalar_lea.vmem %s3, %s273
        $region32: #{tpu_custom_call.1} parent=15 // pred_fallthru
          _
      $region16: #{tpu_custom_call.1} parent=5 // pred_fallthru
        _
      %p275 = scmp.le.s32.totalorder 1, %s13
      %p276 = scmp.lt.s32.totalorder %s13, 9
      %p277 = pnand %p275, %p276
      %p278 = pneg %p277
      // Predicated region
      $region33: #{tpu_custom_call.1} parent=5 // pred_check
        _
      $region34: #{tpu_custom_call.1} parent=5 // pred_check_branch
        %280 = sbr.rel (%p277) target = $region36
      $region35: #{tpu_custom_call.1} parent=5 // pred_region
        %s281 = ssub.s32 %s13, 1
        %p282 = scmp.lt.s32.totalorder %s24, 1
        %s283 = scalar_select %p282, %s24, 1
        %p284 = scmp.lt.s32.totalorder %s25, 3
        %s285 = scalar_select %p284, %s25, 3
        %p286 = scmp.lt.s32.totalorder %s26, 0
        %s287 = scalar_select %p286, %s26, 0
        %s288 = sadd.s32 %s287, %s285
        %s289 = smul.addr %s283, 4
        %s290 = sadd.s32 %s288, %s289
        %s291 = smul.addr %s290, 8
        %s292 = scalar_lea.vmem %s0, %s291
        %p293 = pneg %p69
        %p294 = pneg %p66
        %s295 = smul.u32 16, %s27
        %p296 = scmp.lt.s32.totalorder %s24, 1
        %s297 = scalar_select %p296, %s24, 1
        %p298 = scmp.lt.s32.totalorder %s25, 3
        %s299 = scalar_select %p298, %s25, 3
        %p300 = scmp.lt.s32.totalorder %s295, 15
        %s301 = scalar_select %p300, %s295, 15
        %s302 = smul.addr %s299, 16
        %s303 = sadd.s32 %s301, %s302
        %s304 = smul.addr %s297, 64
        %s305 = sadd.s32 %s303, %s304
        %s306 = smul.addr %s305, 8
        %s307 = scalar_lea.vmem %s1, %s306
        %p308 = pneg %p99
        %p309 = pneg %p96
        %s310 = smul.u32 16, %s27
        %p311 = scmp.lt.s32.totalorder %s24, 1
        %s312 = scalar_select %p311, %s24, 1
        %p313 = scmp.lt.s32.totalorder %s25, 3
        %s314 = scalar_select %p313, %s25, 3
        %p315 = scmp.lt.s32.totalorder %s310, 15
        %s316 = scalar_select %p315, %s310, 15
        %s317 = smul.addr %s314, 16
        %s318 = sadd.s32 %s316, %s317
        %s319 = smul.addr %s312, 64
        %s320 = sadd.s32 %s318, %s319
        %s321 = smul.addr %s320, 8
        %s322 = scalar_lea.vmem %s2, %s321
        %p323 = pneg %p129
        %p324 = pneg %p126
        %p325 = scmp.lt.s32.totalorder %s24, 1
        %s326 = scalar_select %p325, %s24, 1
        %p327 = scmp.lt.s32.totalorder %s25, 3
        %s328 = scalar_select %p327, %s25, 3
        %p329 = scmp.lt.s32.totalorder %s26, 0
        %s330 = scalar_select %p329, %s26, 0
        %p331 = scmp.lt.s32.totalorder %s27, 0
        %s332 = scalar_select %p331, %s27, 0
        %s333 = sadd.s32 %s332, %s330
        %s334 = sadd.s32 %s333, %s328
        %s335 = smul.addr %s326, 4
        %s336 = sadd.s32 %s334, %s335
        %s337 = smul.addr %s336, 2
        %s338 = scalar_lea.vmem %s3, %s337
        %p339 = pneg %p161
        %p340 = pneg %p158
        %p341 = pneg %p191
        %p342 = pneg %p188
        %s343 = sand.u32 %s178, 1
        %s344 = scalar_lea.sflag [#allocation7], %s343
        %s345 = sand.u32 %s178, 1
        %s346 = smul.addr %s345, 8
        %s347 = scalar_lea.vmem [#allocation6], %s346
        %p348 = scmp.lt.s32.totalorder %s24, 1
        %s349 = scalar_select %p348, %s24, 1
        %p350 = scmp.lt.s32.totalorder %s25, 3
        %s351 = scalar_select %p350, %s25, 3
        %p352 = scmp.lt.s32.totalorder %s26, 0
        %s353 = scalar_select %p352, %s26, 0
        %s354 = sadd.s32 %s353, %s351
        %s355 = smul.addr %s349, 4
        %s356 = sadd.s32 %s354, %s355
        %s357 = smul.addr %s356, 8
        %s358 = scalar_lea.vmem %s0, %s357
        %s359 = smul.u32 16, %s27
        %p360 = scmp.lt.s32.totalorder %s24, 1
        %s361 = scalar_select %p360, %s24, 1
        %p362 = scmp.lt.s32.totalorder %s25, 3
        %s363 = scalar_select %p362, %s25, 3
        %p364 = scmp.lt.s32.totalorder %s359, 15
        %s365 = scalar_select %p364, %s359, 15
        %s366 = smul.addr %s363, 16
        %s367 = sadd.s32 %s365, %s366
        %s368 = smul.addr %s361, 64
        %s369 = sadd.s32 %s367, %s368
        %s370 = smul.addr %s369, 8
        %s371 = scalar_lea.vmem %s1, %s370
        %s372 = smul.u32 16, %s27
        %s373 = smul.u32 16, %s27
        %p374 = scmp.lt.s32.totalorder %s24, 1
        %s375 = scalar_select %p374, %s24, 1
        %p376 = scmp.lt.s32.totalorder %s25, 3
        %s377 = scalar_select %p376, %s25, 3
        %p378 = scmp.lt.s32.totalorder %s373, 15
        %s379 = scalar_select %p378, %s373, 15
        %s380 = smul.addr %s377, 16
        %s381 = sadd.s32 %s379, %s380
        %s382 = smul.addr %s375, 64
        %s383 = sadd.s32 %s381, %s382
        %s384 = smul.addr %s383, 8
        %s385 = scalar_lea.vmem %s2, %s384
        %s386 = smul.u32 16, %s27
        %p387 = scmp.lt.s32.totalorder %s24, 1
        %s388 = scalar_select %p387, %s24, 1
        %p389 = scmp.lt.s32.totalorder %s25, 3
        %s390 = scalar_select %p389, %s25, 3
        %p391 = scmp.lt.s32.totalorder %s26, 0
        %s392 = scalar_select %p391, %s26, 0
        %p393 = scmp.lt.s32.totalorder %s27, 0
        %s394 = scalar_select %p393, %s27, 0
        %s395 = sadd.s32 %s394, %s392
        %s396 = sadd.s32 %s395, %s390
        %s397 = smul.addr %s388, 4
        %s398 = sadd.s32 %s396, %s397
        %s399 = smul.addr %s398, 2
        %s400 = scalar_lea.vmem %s3, %s399
        %p403 = scmp.eq.s32.totalorder %s27, 0
        // Predicated region
        $region37: #{tpu_custom_call.1} parent=35 // pred_check
          %p404 = pneg %p403
        $region38: #{tpu_custom_call.1} parent=35 // pred_check_branch
          %406 = sbr.rel (%p404) target = $region40
        $region39: #{tpu_custom_call.1} parent=35 // pred_region
          %vm407 = vcmask 7168
          %408 = vst.msk [vmem:[#allocation2] sm:$0xff] %vm407, -1e+30
          %409 = vst.msk [vmem:[#allocation3] sm:$0xff] %vm407, 0.0
          %vm410 = vcmask 261120
          %411 = vst.msk [vmem:[#allocation4] sm:$0xff] %vm410, 0.0
          %v412 = vld [vmem:[%s358] sm:$0xff]
          %v413 = vmul.f32 %v412, 0.17677669
          %414 = vst.msk [vmem:[#allocation5] sm:$0xff] %vm410, %v413
        $region40: #{tpu_custom_call.1} parent=35 // pred_fallthru
          _
        %v415 = vld [vmem:[#allocation5] sm:$0xff]
        %v416 = vld [vmem:[%s371] sm:$0xff]
        %v417 = vld [vmem:[%s371 + $0x8] sm:$0xff]
        %v418 = vld [vmem:[%s371 + $0x10] sm:$0xff]
        %v419 = vld [vmem:[%s371 + $0x18] sm:$0xff]
        %v420 = vld [vmem:[%s371 + $0x20] sm:$0xff]
        %v421 = vld [vmem:[%s371 + $0x28] sm:$0xff]
        %v422 = vld [vmem:[%s371 + $0x30] sm:$0xff]
        %v423 = vld [vmem:[%s371 + $0x38] sm:$0xff]
        %v424 = vld [vmem:[%s371 + $0x40] sm:$0xff]
        %v425 = vld [vmem:[%s371 + $0x48] sm:$0xff]
        %v426 = vld [vmem:[%s371 + $0x50] sm:$0xff]
        %v427 = vld [vmem:[%s371 + $0x58] sm:$0xff]
        %v428 = vld [vmem:[%s371 + $0x60] sm:$0xff]
        %v429 = vld [vmem:[%s371 + $0x68] sm:$0xff]
        %v430 = vld [vmem:[%s371 + $0x70] sm:$0xff]
        %v431 = vld [vmem:[%s371 + $0x78] sm:$0xff]
        %vm432 = vcmask 261120
        %v434 = vsel %vm432, %v415, 0
        %v437 = vsel %vm432, %v416, 0
        %v440 = vsel %vm432, %v417, 0
        %v443 = vsel %vm432, %v418, 0
        %v446 = vsel %vm432, %v419, 0
        %v449 = vsel %vm432, %v420, 0
        %v452 = vsel %vm432, %v421, 0
        %v455 = vsel %vm432, %v422, 0
        %v458 = vsel %vm432, %v423, 0
        %v461 = vsel %vm432, %v424, 0
        %v464 = vsel %vm432, %v425, 0
        %v467 = vsel %vm432, %v426, 0
        %v470 = vsel %vm432, %v427, 0
        %v473 = vsel %vm432, %v428, 0
        %v476 = vsel %vm432, %v429, 0
        %v479 = vsel %vm432, %v430, 0
        %v482 = vsel %vm432, %v431, 0
        %484 = vmatprep.subr.mxu0 0.0
        %485 = vmatpush1.xpose.msra.mxu0 %v482
        %486 = vmatprep.subr.mxu0 0.0
        %487 = vmatpush1.xpose.msra.mxu0 %v479
        %488 = vmatprep.subr.mxu0 0.0
        %489 = vmatpush1.xpose.msra.mxu0 %v476
        %490 = vmatprep.subr.mxu0 0.0
        %491 = vmatpush1.xpose.msra.mxu0 %v473
        %492 = vmatprep.subr.mxu0 0.0
        %493 = vmatpush1.xpose.msra.mxu0 %v470
        %494 = vmatprep.subr.mxu0 0.0
        %495 = vmatpush1.xpose.msra.mxu0 %v467
        %496 = vmatprep.subr.mxu0 0.0
        %497 = vmatpush1.xpose.msra.mxu0 %v464
        %498 = vmatprep.subr.mxu0 0.0
        %499 = vmatpush1.xpose.msra.mxu0 %v461
        %500 = vmatprep.subr.mxu0 0.0
        %501 = vmatpush1.xpose.msra.mxu0 %v458
        %502 = vmatprep.subr.mxu0 0.0
        %503 = vmatpush1.xpose.msra.mxu0 %v455
        %504 = vmatprep.subr.mxu0 0.0
        %505 = vmatpush1.xpose.msra.mxu0 %v452
        %506 = vmatprep.subr.mxu0 0.0
        %507 = vmatpush1.xpose.msra.mxu0 %v449
        %508 = vmatprep.subr.mxu0 0.0
        %509 = vmatpush1.xpose.msra.mxu0 %v446
        %510 = vmatprep.subr.mxu0 0.0
        %511 = vmatpush1.xpose.msra.mxu0 %v443
        %512 = vmatprep.subr.mxu0 0.0
        %513 = vmatpush1.xpose.msra.mxu0 %v440
        %514 = vmatprep.subr.mxu0 0.0
        %515 = vmatpush1.xpose.msra.mxu0 %v437
        %516 = vmatprep.subr.mxu0 0.0
        %517 = vmatpush2.xpose.msra.mxu0 0.0
        %518 = vmatprep.subr.mxu0 0.0
        %519 = vmatpush2.xpose.msra.mxu0 0.0
        %520 = vmatprep.subr.mxu0 0.0
        %521 = vmatpush2.xpose.msra.mxu0 0.0
        %522 = vmatprep.subr.mxu0 0.0
        %523 = vmatpush2.xpose.msra.mxu0 0.0
        %524 = vmatprep.subr.mxu0 0.0
        %525 = vmatpush2.xpose.msra.mxu0 0.0
        %526 = vmatprep.subr.mxu0 0.0
        %527 = vmatpush2.xpose.msra.mxu0 0.0
        %528 = vmatprep.subr.mxu0 0.0
        %529 = vmatpush2.xpose.msra.mxu0 0.0
        %530 = vmatprep.subr.mxu0 0.0
        %531 = vmatpush2.xpose.msra.mxu0 0.0
        %532 = vmatprep.subr.mxu0 0.0
        %533 = vmatpush2.xpose.msra.mxu0 0.0
        %534 = vmatprep.subr.mxu0 0.0
        %535 = vmatpush2.xpose.msra.mxu0 0.0
        %536 = vmatprep.subr.mxu0 0.0
        %537 = vmatpush2.xpose.msra.mxu0 0.0
        %538 = vmatprep.subr.mxu0 0.0
        %539 = vmatpush2.xpose.msra.mxu0 0.0
        %540 = vmatprep.subr.mxu0 0.0
        %541 = vmatpush2.xpose.msra.mxu0 0.0
        %542 = vmatprep.subr.mxu0 0.0
        %543 = vmatpush2.xpose.msra.mxu0 0.0
        %544 = vmatprep.subr.mxu0 0.0
        %545 = vmatpush2.xpose.msra.mxu0 0.0
        %546 = vmatprep.subr.mxu0 0.0
        %547 = vmatpush2.xpose.msra.mxu0 0.0
        %548 = vmatprep.mubr.f32.mxu0 0.0
        %549 = vmatmul.mubr.f32.gmra.mxu0 %v434
        %v550 = vpop.f32.mrf.mxu0
        %v551 = vadd.f32 0.0, %v550
        %v552 = vpop.f32.mrf.mxu0
        %553 = vdwg.mxu0
        %v554 = vld [vmem:[%s400] sm:$0x3]
        %vm555 = vnez %v554
        %v556 = vsel %vm555, 16843009, 0
        %v557 = vunpack.c.0.s8 %v556
        %vm558 = vcmp.ne.s32.totalorder %v557, 0
        %v559 = vsel %vm558, %v551, -1e+30
        %s560 = smul.u32 %s27, 128
        %v561 = vlaneseq
        %v562 = vand.u32 %v561, 127
        %v563 = vstv %s560
        %v564 = vadd.s32 %v563, %v562
        %vm565 = vcmp.lt.s32.totalorder %v564, 8
        %v566 = vsel %vm565, %v559, -1e+30
        %v567 = vld [vmem:[#allocation2] sm:$0xff]
        %568 = vmax.xlane.f32.xlu0 %v566
        %v569 = vpop.xlane.xlu0 %568
        %v570 = vmax.f32 %v567, %v569
        %v571 = vsub.f32 %v567, %v570
        %v572 = vmul.f32 %v571, 1.442695
        %v573 = vpow.pop %v572
        %575 = vset.pattern.permute.xlu0 0
        %576 = vperm.xlu0 %575, %v570
        %v577 = vpop.permute.xlu0 %576
        %v579 = vsub.f32 %v566, %v577
        %v580 = vmul.f32 %v579, 1.442695
        %v581 = vpow.pop %v580
        %v582 = vld [vmem:[#allocation3] sm:$0xff]
        %v583 = vmul.f32 %v573, %v582
        %584 = vadd.xlane.f32.xlu0 %v581
        %v585 = vpop.xlane.xlu0 %584
        %v586 = vadd.f32 %v583, %v585
        %vm587 = vcmask 7168
        %588 = vst.msk [vmem:[#allocation3] sm:$0xff] %vm587, %v586
        %589 = vst.msk [vmem:[#allocation2] sm:$0xff] %vm587, %v570
        %v590 = vld [vmem:[#allocation4] sm:$0xff]
        %592 = vset.pattern.permute.xlu0 0
        %593 = vperm.xlu0 %592, %v573
        %v594 = vpop.permute.xlu0 %593
        %v596 = vmul.f32 %v594, %v590
        %v597 = vld [vmem:[%s385] sm:$0xff]
        %v598 = vld [vmem:[%s385 + $0x8] sm:$0xff]
        %v599 = vld [vmem:[%s385 + $0x10] sm:$0xff]
        %v600 = vld [vmem:[%s385 + $0x18] sm:$0xff]
        %v601 = vld [vmem:[%s385 + $0x20] sm:$0xff]
        %v602 = vld [vmem:[%s385 + $0x28] sm:$0xff]
        %v603 = vld [vmem:[%s385 + $0x30] sm:$0xff]
        %v604 = vld [vmem:[%s385 + $0x38] sm:$0xff]
        %v605 = vld [vmem:[%s385 + $0x40] sm:$0xff]
        %v606 = vld [vmem:[%s385 + $0x48] sm:$0xff]
        %v607 = vld [vmem:[%s385 + $0x50] sm:$0xff]
        %v608 = vld [vmem:[%s385 + $0x58] sm:$0xff]
        %v609 = vld [vmem:[%s385 + $0x60] sm:$0xff]
        %v610 = vld [vmem:[%s385 + $0x68] sm:$0xff]
        %v611 = vld [vmem:[%s385 + $0x70] sm:$0xff]
        %v612 = vld [vmem:[%s385 + $0x78] sm:$0xff]
        %613 = vmatprep.subr.mxu0 0.0
        %614 = vmatpush1.msra.mxu0 %v612
        %615 = vmatprep.subr.mxu0 0.0
        %616 = vmatpush1.msra.mxu0 %v611
        %617 = vmatprep.subr.mxu0 0.0
        %618 = vmatpush1.msra.mxu0 %v610
        %619 = vmatprep.subr.mxu0 0.0
        %620 = vmatpush1.msra.mxu0 %v609
        %621 = vmatprep.subr.mxu0 0.0
        %622 = vmatpush1.msra.mxu0 %v608
        %623 = vmatprep.subr.mxu0 0.0
        %624 = vmatpush1.msra.mxu0 %v607
        %625 = vmatprep.subr.mxu0 0.0
        %626 = vmatpush1.msra.mxu0 %v606
        %627 = vmatprep.subr.mxu0 0.0
        %628 = vmatpush1.msra.mxu0 %v605
        %629 = vmatprep.subr.mxu0 0.0
        %630 = vmatpush1.msra.mxu0 %v604
        %631 = vmatprep.subr.mxu0 0.0
        %632 = vmatpush1.msra.mxu0 %v603
        %633 = vmatprep.subr.mxu0 0.0
        %634 = vmatpush1.msra.mxu0 %v602
        %635 = vmatprep.subr.mxu0 0.0
        %636 = vmatpush1.msra.mxu0 %v601
        %637 = vmatprep.subr.mxu0 0.0
        %638 = vmatpush1.msra.mxu0 %v600
        %639 = vmatprep.subr.mxu0 0.0
        %640 = vmatpush1.msra.mxu0 %v599
        %641 = vmatprep.subr.mxu0 0.0
        %642 = vmatpush1.msra.mxu0 %v598
        %643 = vmatprep.subr.mxu0 0.0
        %644 = vmatpush1.msra.mxu0 %v597
        %645 = vmatprep.subr.mxu0 0.0
        %646 = vmatpush2.msra.mxu0 0.0
        %647 = vmatprep.subr.mxu0 0.0
        %648 = vmatpush2.msra.mxu0 0.0
        %649 = vmatprep.subr.mxu0 0.0
        %650 = vmatpush2.msra.mxu0 0.0
        %651 = vmatprep.subr.mxu0 0.0
        %652 = vmatpush2.msra.mxu0 0.0
        %653 = vmatprep.subr.mxu0 0.0
        %654 = vmatpush2.msra.mxu0 0.0
        %655 = vmatprep.subr.mxu0 0.0
        %656 = vmatpush2.msra.mxu0 0.0
        %657 = vmatprep.subr.mxu0 0.0
        %658 = vmatpush2.msra.mxu0 0.0
        %659 = vmatprep.subr.mxu0 0.0
        %660 = vmatpush2.msra.mxu0 0.0
        %661 = vmatprep.subr.mxu0 0.0
        %662 = vmatpush2.msra.mxu0 0.0
        %663 = vmatprep.subr.mxu0 0.0
        %664 = vmatpush2.msra.mxu0 0.0
        %665 = vmatprep.subr.mxu0 0.0
        %666 = vmatpush2.msra.mxu0 0.0
        %667 = vmatprep.subr.mxu0 0.0
        %668 = vmatpush2.msra.mxu0 0.0
        %669 = vmatprep.subr.mxu0 0.0
        %670 = vmatpush2.msra.mxu0 0.0
        %671 = vmatprep.subr.mxu0 0.0
        %672 = vmatpush2.msra.mxu0 0.0
        %673 = vmatprep.subr.mxu0 0.0
        %674 = vmatpush2.msra.mxu0 0.0
        %675 = vmatprep.subr.mxu0 0.0
        %676 = vmatpush2.msra.mxu0 0.0
        %677 = vmatprep.mubr.f32.mxu0 0.0
        %678 = vmatmul.mubr.f32.gmra.mxu0 %v581
        %v679 = vpop.f32.mrf.mxu0
        %v680 = vadd.f32 0.0, %v679
        %v681 = vpop.f32.mrf.mxu0
        %682 = vdwg.mxu0
        %v683 = vadd.f32 %v596, %v680
        %684 = vst.msk [vmem:[#allocation4] sm:$0xff] %vm432, %v683
        // Predicated region
        $region41: #{tpu_custom_call.1} parent=35 // pred_check
          %p685 = pneg %p403
        $region42: #{tpu_custom_call.1} parent=35 // pred_check_branch
          %687 = sbr.rel (%p685) target = $region44
        $region43: #{tpu_custom_call.1} parent=35 // pred_region
          %v688 = vld [vmem:[#allocation3] sm:$0xff]
          %v689 = vrcp.pop %v688
          %v690 = vld [vmem:[#allocation4] sm:$0xff]
          %692 = vset.pattern.permute.xlu0 0
          %693 = vperm.xlu0 %692, %v689
          %v694 = vpop.permute.xlu0 %693
          %v696 = vmul.f32 %v690, %v694
          %697 = vst.msk [vmem:[%s347] sm:$0xff] %vm432, %v696
        $region44: #{tpu_custom_call.1} parent=35 // pred_fallthru
          _
        %s698 = sand.u32 %s178, 1
        %s699 = scalar_lea.sflag [#allocation7], %s698
        %s700 = sand.u32 %s178, 1
        %s701 = smul.addr %s700, 8
        %s702 = scalar_lea.vmem [#allocation6], %s701
        // Predicated region
        $region45: #{tpu_custom_call.1} parent=35 // pred_check
          %p703 = pneg %p188
        $region46: #{tpu_custom_call.1} parent=35 // pred_check_branch
          %705 = sbr.rel (%p703) target = $region48
        $region47: #{tpu_custom_call.1} parent=35 // pred_region
          %s707 = ssub.s32 128, 128
          %708 = vsyncadd %s699, %s707
          %s709 = sadd.s32 %s26, %s25
          %s710 = smul.addr %s24, 4
          %s711 = sadd.s32 %s709, %s710
          %s712 = smul.addr %s711, 128
          %s713 = scalar_lea.hbm %s4, %s712
          %s715 = sshll.u32 %s702, 4
          %s716 = int_to_ptr.vmem [resolvable:$true] %s715
          %718 = dma.vmem_to_hbm [thread:$0]  %s716, 128, %s713, %s699
        $region48: #{tpu_custom_call.1} parent=35 // pred_fallthru
          _
      $region36: #{tpu_custom_call.1} parent=5 // pred_fallthru
        _
      %p719 = scmp.le.s32.totalorder 2, %s13
      // Predicated region
      $region49: #{tpu_custom_call.1} parent=5 // pred_check
        %p720 = pneg %p719
      $region50: #{tpu_custom_call.1} parent=5 // pred_check_branch
        %722 = sbr.rel (%p720) target = $region52
      $region51: #{tpu_custom_call.1} parent=5 // pred_region
        %s723 = ssub.s32 %s13, 2
        // Predicated region
        $region53: #{tpu_custom_call.1} parent=51 // pred_check
          %p724 = pneg %p194
        $region54: #{tpu_custom_call.1} parent=51 // pred_check_branch
          %726 = sbr.rel (%p724) target = $region56
        $region55: #{tpu_custom_call.1} parent=51 // pred_region
          %s727 = sand.u32 %s179, 1
          %s728 = scalar_lea.sflag [#allocation7], %s727
          %s729 = sand.u32 %s179, 1
          %s730 = smul.addr %s729, 8
          %s731 = scalar_lea.vmem [#allocation6], %s730
          %732 = dma.done %s728, 128
        $region56: #{tpu_custom_call.1} parent=51 // pred_fallthru
          _
      $region52: #{tpu_custom_call.1} parent=5 // pred_fallthru
        _
    $region6: #{tpu_custom_call.1} parent=1 // loop_footer
      %s17 = sadd.s32 1, %s13
    $region7: #{tpu_custom_call.1} parent=1 // loop_footer_branch
      %12 = sbr.rel target = $region3
    $region8: #{tpu_custom_call.1} parent=1 // loop_exit
      _
    %733 = vsyncpa [#allocation7], 1
    %s734 = scalar_lea.sflag [#allocation7], 1
    %735 = vsyncpa %s734, 1

</llo_original>
